<compile_context>
chip_gen: v6e
topology: v6e:2x2x1
jax: 0.10.0
libtpu: 0.0.40
codegen_flags: <defaults>
</compile_context>

<pallas_src>
import jax
import jax.numpy as jnp
from jax import lax
from jax.experimental import pallas as pl
from jax.experimental.pallas import tpu as pltpu


def bahdanau_kernel(q_ref, k_ref, wat_ref, uat_ref, bias_ref, va_ref, bv_ref,
                    ctx_ref, w_ref):
    # q_ref:    (TB, H)       query  (size-1 middle dim squeezed by BlockSpec)
    # k_ref:    (TB, S, H)    keys
    # wat_ref:  (H, H) = Wa.T ; uat_ref: (H, H) = Ua.T   (x @ W.T == x @ W_T)
    # bias_ref: (1, H) = ba + bu  (fused projection bias, f32)
    # va_ref:   (1, H) f32    ; bv_ref: (1, 1) scalar in SMEM
    # ctx_ref:  (TB, H)       context (squeezed -> dense, unmasked store)
    # w_ref:    (TB, S)       attention weights (lane-dense along S)
    TB, S, H = k_ref.shape
    q = q_ref[...]                                   # (TB, H)
    k = k_ref[...]                                   # (TB, S, H)

    # Linear projections on the MXU (weights pre-transposed; f32 accumulate).
    qp = jnp.dot(q, wat_ref[...],
                 preferred_element_type=jnp.float32)                       # (TB, H)
    kp = jnp.dot(k.reshape(TB * S, H), uat_ref[...],
                 preferred_element_type=jnp.float32)                       # (TB*S, H)

    # Fused bias is added only to the small (TB, H) tensor, not (TB, S, H).
    t = jnp.tanh(kp.reshape(TB, S, H) + (qp + bias_ref[...])[:, None, :])  # (TB,S,H) f32

    # Va score: lane reduction over H; result keeps S on the lane axis.
    e = jnp.sum(t * va_ref[...], axis=-1) + bv_ref[0, 0]                   # (TB, S)

    # Softmax over the sequence (lane) axis; reciprocal on the idle EUP slot.
    m = jnp.max(e, axis=-1, keepdims=True)
    p = jnp.exp(e - m)
    w = p * pl.reciprocal(jnp.sum(p, axis=-1, keepdims=True), approx=True)  # (TB, S)

    # context = weights @ keys.
    if S >= 256:
        # Large S: a batched MXU contraction amortizes the M=1 fill cost.
        ctx = lax.dot_general(w.astype(k.dtype)[:, None, :], k,
                              dimension_numbers=(((2,), (1,)), ((0,), (0,))),
                              preferred_element_type=jnp.float32)[:, 0, :]
    else:
        # Small S: M=1 matmuls waste MXU rows and serialize through the MRF;
        # VPU/XLU slots are idle here, so a multiply + sublane reduce is free.
        ctx = jnp.sum(w[:, :, None] * k.astype(jnp.float32), axis=1)        # (TB, H)

    ctx_ref[...] = ctx.astype(ctx_ref.dtype)
    w_ref[...] = w.astype(w_ref.dtype)


def _tpu_generation():
    """Best-effort TPU generation (5 / 6 / 7) from the device kind string."""
    try:
        kind = jax.devices()[0].device_kind.lower()
    except Exception:
        return None
    for g in (7, 6, 5, 4):
        if f"v{g}" in kind:
            return g
    return None


def _pick_batch_tile(B, S, H, *, in_itemsize=4, gen=None, vmem_budget_bytes=None):
    """Pick TB such that TB | B, the Ua matmul M-dim (TB*S) approaches the MXU
    fill target (128 rows on v5e, 256 on v6e/v7x), the per-step VMEM stays
    under budget, and (v7x only) at least 2 grid steps remain for the 2 TCs."""
    if vmem_budget_bytes is None:
        # Stay comfortably under the default scoped VMEM limit on every chip.
        vmem_budget_bytes = (24 << 20) if gen in (6, 7) else (12 << 20)

    def vmem_bytes(tb):
        keys_io  = 2 * tb * S * H * in_itemsize        # double-buffered keys tile
        small_io = 2 * tb * (2 * H + S) * 4            # query + ctx + weights tiles
        weights  = 2 * 2 * H * H * in_itemsize         # Wa^T / Ua^T (double-buffered)
        scratch  = 3 * tb * S * H * 4                  # f32 intermediates (kp, t, ...)
        return keys_io + small_io + weights + scratch

    target_rows = 128 if gen == 5 else 256
    tb = min(B, max(1, pl.cdiv(target_rows, S)))
    if gen == 7 and B >= 2:
        tb = min(tb, max(1, B // 2))                   # keep >=2 parallel grid steps
    while tb > 1 and (B % tb != 0 or vmem_bytes(tb) > vmem_budget_bytes):
        tb -= 1
    return tb


def _const_spec(block_shape, *, single_buffer):
    """BlockSpec for a grid-invariant operand; single-buffer it when large."""
    index_map = lambda b: (0,) * len(block_shape)
    if single_buffer and hasattr(pl, "Buffered"):
        # Grid-invariant block: the second pipeline buffer is pure VMEM waste.
        return pl.BlockSpec(block_shape, index_map, pipeline_mode=pl.Buffered(1))
    return pl.BlockSpec(block_shape, index_map)


def bahdanau_attention(query, keys, Wa, ba, Ua, bu, Va, bv, *,
                       tb=None, matmul_dtype=None):
    """query: (B,1,H), keys: (B,S,H).
    Returns (context (B,1,H), weights (B,1,S)) matching the PyTorch module.

    matmul_dtype=jnp.bfloat16 feeds the MXU bf16 (recommended on v6e/v7x for
    large H/S); elementwise math stays f32.  Default None keeps f32 semantics.
    """
    B, _, H = query.shape
    S = keys.shape[1]
    gen = _tpu_generation()

    in_dtype = jnp.dtype(matmul_dtype) if matmul_dtype is not None else jnp.dtype(query.dtype)
    if tb is None:
        tb = _pick_batch_tile(B, S, H, in_itemsize=in_dtype.itemsize, gen=gen)
    assert B % tb == 0, (B, tb)

    # One-time host/XLA-side prep (no in-kernel transposes).
    WaT = jnp.transpose(Wa).astype(in_dtype)                 # (H, H)
    UaT = jnp.transpose(Ua).astype(in_dtype)                 # (H, H)
    bias = (ba + bu).reshape(1, H).astype(jnp.float32)       # fused projection bias
    Va2 = Va.reshape(1, H).astype(jnp.float32)
    bv2 = bv.reshape(1, 1).astype(jnp.float32)
    q_in = query.astype(in_dtype)
    k_in = keys.astype(in_dtype)

    single_buffer = (H * H * in_dtype.itemsize) >= (1 << 20)  # >=1 MiB per weight matrix

    ctx, w = pl.pallas_call(
        bahdanau_kernel,
        out_shape=(
            jax.ShapeDtypeStruct((B, 1, H), jnp.float32),
            jax.ShapeDtypeStruct((B, 1, S), jnp.float32),
        ),
        grid_spec=pltpu.PrefetchScalarGridSpec(
            num_scalar_prefetch=0,
            grid=(B // tb,),
            # TODO(synk): for very large S*H on v7x (64 MiB VMEM) add a second
            # 'arbitrary' grid axis over S with online-softmax accumulators
            # instead of shrinking tb toward 1.
            in_specs=[
                pl.BlockSpec((tb, None, H), lambda b: (b, 0, 0)),   # query (squeezed)
                pl.BlockSpec((tb, S, H), lambda b: (b, 0, 0)),      # keys
                _const_spec((H, H), single_buffer=single_buffer),   # Wa^T (grid-invariant)
                _const_spec((H, H), single_buffer=single_buffer),   # Ua^T (grid-invariant)
                pl.BlockSpec((1, H), lambda b: (0, 0)),             # ba + bu (fused)
                pl.BlockSpec((1, H), lambda b: (0, 0)),             # Va row
                pl.BlockSpec(memory_space=pltpu.MemorySpace.SMEM),  # bv scalar
            ],
            out_specs=[
                pl.BlockSpec((tb, None, H), lambda b: (b, 0, 0)),   # context, dense (tb,H) store
                pl.BlockSpec((tb, None, S), lambda b: (b, 0, 0)),   # weights, lane-dense S
            ],
        ),
        compiler_params=pltpu.CompilerParams(
            dimension_semantics=("parallel",)),
    )(q_in, k_in, WaT, UaT, bias, Va2, bv2)

    return ctx, w


def bahdanau_reference(query, keys, Wa, ba, Ua, bu, Va, bv):
    qp = query @ Wa.T + ba                      # (B,1,H)
    kp = keys @ Ua.T + bu                       # (B,S,H)
    scores = jnp.tanh(qp + kp) @ Va.T + bv      # (B,S,1)
    scores = jnp.transpose(scores, (0, 2, 1))   # (B,1,S)
    weights = jax.nn.softmax(scores, axis=-1)
    context = jnp.einsum("bqs,bsh->bqh", weights, keys)
    return context, weights


if __name__ == "__main__":
    H = 128   # hidden_size in the original module
    B = 8     # small batch; enough to exercise batch tiling
    S = 8     # source sequence length

    key = jax.random.PRNGKey(0)
    kq, kk, k1, k2, k3, k4, k5, k6 = jax.random.split(key, 8)

    query = jax.random.normal(kq, (B, 1, H), dtype=jnp.float32)
    keys_ = jax.random.normal(kk, (B, S, H), dtype=jnp.float32)

    # nn.Linear weight shapes: (out, in); bias: (out,)
    Wa = jax.random.normal(k1, (H, H), dtype=jnp.float32) * 0.1
    ba = jax.random.normal(k2, (H,), dtype=jnp.float32) * 0.1
    Ua = jax.random.normal(k3, (H, H), dtype=jnp.float32) * 0.1
    bu = jax.random.normal(k4, (H,), dtype=jnp.float32) * 0.1
    Va = jax.random.normal(k5, (1, H), dtype=jnp.float32) * 0.1
    bv = jax.random.normal(k6, (1,), dtype=jnp.float32) * 0.1

    ctx_ref, w_ref = bahdanau_reference(query, keys_, Wa, ba, Ua, bu, Va, bv)

    # f32 path (module-exact math; approx-reciprocal softmax -> modest tol).
    ctx, w = bahdanau_attention(query, keys_, Wa, ba, Ua, bu, Va, bv)
    jax.block_until_ready((ctx, w))
    assert ctx.shape == (B, 1, H) and w.shape == (B, 1, S)
    assert jnp.allclose(ctx, ctx_ref, atol=5e-3, rtol=5e-3), \
        float(jnp.max(jnp.abs(ctx - ctx_ref)))
    assert jnp.allclose(w, w_ref, atol=5e-3, rtol=5e-3), \
        float(jnp.max(jnp.abs(w - w_ref)))

    # bf16-MXU path (v6e/v7x perf feedback): matmul inputs bf16, elementwise f32.
    ctx_bf, w_bf = bahdanau_attention(query, keys_, Wa, ba, Ua, bu, Va, bv,
                                      matmul_dtype=jnp.bfloat16)
    jax.block_until_ready((ctx_bf, w_bf))
    assert jnp.allclose(ctx_bf, ctx_ref, atol=5e-2, rtol=5e-2)
    assert jnp.allclose(w_bf, w_ref, atol=5e-2, rtol=5e-2)

    print("KERNEL_OK")
</pallas_src>

<mosaic_0001>
module attributes {stable_mosaic.version = 11 : i64} {
  func.func @bahdanau_kernel(%arg0: i32, %arg1: memref<8x1x128xf32, #tpu.memory_space<vmem>>, %arg2: memref<8x8x128xf32, #tpu.memory_space<vmem>>, %arg3: memref<128x128xf32, #tpu.memory_space<vmem>>, %arg4: memref<128x128xf32, #tpu.memory_space<vmem>>, %arg5: memref<1x128xf32, #tpu.memory_space<vmem>>, %arg6: memref<1x128xf32, #tpu.memory_space<vmem>>, %arg7: memref<1x1xf32, #tpu.memory_space<smem>>, %arg8: memref<8x1x128xf32, #tpu.memory_space<vmem>>, %arg9: memref<8x1x8xf32, #tpu.memory_space<vmem>>) attributes {dimension_semantics = [#tpu.dimension_semantics<parallel>], iteration_bounds = array<i64: 1>, scalar_prefetch = 0 : i64, scratch_operands = 0 : i64, tpu.core_type = #tpu.core_type<tc>, window_params = [{transform_indices = @transform_0, window_bounds = array<i64: 8, 1, 128>}, {transform_indices = @transform_1, window_bounds = array<i64: 8, 8, 128>}, {pipeline_mode = #tpu.pipeline_mode<synchronous>, transform_indices = @transform_2, window_bounds = array<i64: 128, 128>}, {pipeline_mode = #tpu.pipeline_mode<synchronous>, transform_indices = @transform_3, window_bounds = array<i64: 128, 128>}, {pipeline_mode = #tpu.pipeline_mode<synchronous>, transform_indices = @transform_4, window_bounds = array<i64: 1, 128>}, {pipeline_mode = #tpu.pipeline_mode<synchronous>, transform_indices = @transform_5, window_bounds = array<i64: 1, 128>}, {transform_indices = @transform_6, window_bounds = array<i64: 1, 1>}, {transform_indices = @transform_7, window_bounds = array<i64: 8, 1, 128>}, {transform_indices = @transform_8, window_bounds = array<i64: 8, 1, 8>}]} {
    %c0 = arith.constant 0 : index
    %c0_0 = arith.constant 0 : index
    %c0_1 = arith.constant 0 : index
    %0 = vector.load %arg1[%c0, %c0_0, %c0_1] : memref<8x1x128xf32, #tpu.memory_space<vmem>>, vector<8x1x128xf32>
    %1 = vector.shape_cast %0 : vector<8x1x128xf32> to vector<8x128xf32>
    %c0_2 = arith.constant 0 : index
    %c0_3 = arith.constant 0 : index
    %c0_4 = arith.constant 0 : index
    %2 = vector.load %arg2[%c0_2, %c0_3, %c0_4] : memref<8x8x128xf32, #tpu.memory_space<vmem>>, vector<8x8x128xf32>
    %c0_5 = arith.constant 0 : index
    %c0_6 = arith.constant 0 : index
    %3 = vector.load %arg3[%c0_5, %c0_6] : memref<128x128xf32, #tpu.memory_space<vmem>>, vector<128x128xf32>
    %cst = arith.constant dense<0.000000e+00> : vector<8x128xf32>
    %4 = tpu.matmul %1, %3, %cst {dimension_numbers = #tpu.dot_dimension_numbers<[1], [0], [0], [1], [0, 0, 1, 1], [], []>} : vector<8x128xf32>, vector<128x128xf32>, vector<8x128xf32> -> vector<8x128xf32>
    %5 = vector.shape_cast %2 : vector<8x8x128xf32> to vector<64x128xf32>
    %c0_7 = arith.constant 0 : index
    %c0_8 = arith.constant 0 : index
    %6 = vector.load %arg4[%c0_7, %c0_8] : memref<128x128xf32, #tpu.memory_space<vmem>>, vector<128x128xf32>
    %cst_9 = arith.constant dense<0.000000e+00> : vector<64x128xf32>
    %7 = tpu.matmul %5, %6, %cst_9 {dimension_numbers = #tpu.dot_dimension_numbers<[1], [0], [0], [1], [0, 0, 1, 1], [], []>} : vector<64x128xf32>, vector<128x128xf32>, vector<64x128xf32> -> vector<64x128xf32>
    %8 = vector.shape_cast %7 : vector<64x128xf32> to vector<8x8x128xf32>
    %c0_10 = arith.constant 0 : index
    %c0_11 = arith.constant 0 : index
    %9 = vector.load %arg5[%c0_10, %c0_11] : memref<1x128xf32, #tpu.memory_space<vmem>>, vector<1x128xf32>
    %10 = vector.broadcast %9 : vector<1x128xf32> to vector<8x128xf32>
    %11 = arith.addf %4, %10 : vector<8x128xf32>
    %12 = vector.shape_cast %11 : vector<8x128xf32> to vector<8x1x128xf32>
    %13 = vector.broadcast %12 : vector<8x1x128xf32> to vector<8x8x128xf32>
    %14 = arith.addf %8, %13 : vector<8x8x128xf32>
    %15 = math.tanh %14 : vector<8x8x128xf32>
    %c0_12 = arith.constant 0 : index
    %c0_13 = arith.constant 0 : index
    %16 = vector.load %arg6[%c0_12, %c0_13] : memref<1x128xf32, #tpu.memory_space<vmem>>, vector<1x128xf32>
    %17 = vector.shape_cast %16 : vector<1x128xf32> to vector<1x1x128xf32>
    %18 = vector.broadcast %17 : vector<1x1x128xf32> to vector<8x8x128xf32>
    %19 = arith.mulf %15, %18 : vector<8x8x128xf32>
    %cst_14 = arith.constant dense<0.000000e+00> : vector<8x8xf32>
    %20 = vector.multi_reduction <add>, %19, %cst_14 [2] : vector<8x8x128xf32> to vector<8x8xf32>
    %c0_15 = arith.constant 0 : index
    %c0_16 = arith.constant 0 : index
    %21 = memref.load %arg7[%c0_15, %c0_16] : memref<1x1xf32, #tpu.memory_space<smem>>
    %22 = vector.broadcast %21 : f32 to vector<8x8xf32>
    %23 = arith.addf %20, %22 : vector<8x8xf32>
    %cst_17 = arith.constant dense<0xFF800000> : vector<8xf32>
    %24 = vector.multi_reduction <maximumf>, %23, %cst_17 [1] : vector<8x8xf32> to vector<8xf32>
    %25 = vector.shape_cast %24 : vector<8xf32> to vector<8x1xf32>
    %26 = vector.broadcast %25 : vector<8x1xf32> to vector<8x8xf32>
    %27 = arith.subf %23, %26 : vector<8x8xf32>
    %28 = math.exp %27 : vector<8x8xf32>
    %cst_18 = arith.constant dense<0.000000e+00> : vector<8xf32>
    %29 = vector.multi_reduction <add>, %28, %cst_18 [1] : vector<8x8xf32> to vector<8xf32>
    %30 = vector.shape_cast %29 : vector<8xf32> to vector<8x1xf32>
    %31 = tpu.reciprocal %30 {approx = true} : vector<8x1xf32> -> vector<8x1xf32>
    %32 = vector.broadcast %31 : vector<8x1xf32> to vector<8x8xf32>
    %33 = arith.mulf %28, %32 : vector<8x8xf32>
    %34 = vector.shape_cast %33 : vector<8x8xf32> to vector<8x8x1xf32>
    %35 = vector.broadcast %34 : vector<8x8x1xf32> to vector<8x8x128xf32>
    %36 = arith.mulf %35, %2 : vector<8x8x128xf32>
    %cst_19 = arith.constant dense<0.000000e+00> : vector<8x128xf32>
    %37 = vector.multi_reduction <add>, %36, %cst_19 [1] : vector<8x8x128xf32> to vector<8x128xf32>
    %c0_20 = arith.constant 0 : index
    %c0_21 = arith.constant 0 : index
    %c0_22 = arith.constant 0 : index
    %38 = vector.load %arg8[%c0_20, %c0_21, %c0_22] : memref<8x1x128xf32, #tpu.memory_space<vmem>>, vector<8x1x128xf32>
    %39 = vector.shape_cast %38 : vector<8x1x128xf32> to vector<8x128xf32>
    %40 = vector.shape_cast %37 : vector<8x128xf32> to vector<8x1x128xf32>
    tpu.vector_store %arg8[%c0_20, %c0_21, %c0_22], %40 {strides = array<i32>} : memref<8x1x128xf32, #tpu.memory_space<vmem>>, vector<8x1x128xf32>,
    %c0_23 = arith.constant 0 : index
    %c0_24 = arith.constant 0 : index
    %c0_25 = arith.constant 0 : index
    %41 = vector.load %arg9[%c0_23, %c0_24, %c0_25] : memref<8x1x8xf32, #tpu.memory_space<vmem>>, vector<8x1x8xf32>
    %42 = vector.shape_cast %41 : vector<8x1x8xf32> to vector<8x8xf32>
    %43 = vector.shape_cast %33 : vector<8x8xf32> to vector<8x1x8xf32>
    tpu.vector_store %arg9[%c0_23, %c0_24, %c0_25], %43 {strides = array<i32>} : memref<8x1x8xf32, #tpu.memory_space<vmem>>, vector<8x1x8xf32>,
    return
  }
  func.func @transform_0(%arg0: i32) -> (i32, i32, i32) {
    %c0_i32 = arith.constant 0 : i32
    %c0_i32_0 = arith.constant 0 : i32
    %c0_i32_1 = arith.constant 0 : i32
    return %arg0, %c0_i32, %c0_i32_0 : i32, i32, i32
  }
  func.func @transform_1(%arg0: i32) -> (i32, i32, i32) {
    %c0_i32 = arith.constant 0 : i32
    %c0_i32_0 = arith.constant 0 : i32
    %c0_i32_1 = arith.constant 0 : i32
    return %arg0, %c0_i32, %c0_i32_0 : i32, i32, i32
  }
  func.func @transform_2(%arg0: i32) -> (i32, i32) {
    %c0_i32 = arith.constant 0 : i32
    %c0_i32_0 = arith.constant 0 : i32
    %c0_i32_1 = arith.constant 0 : i32
    return %c0_i32, %c0_i32_0 : i32, i32
  }
  func.func @transform_3(%arg0: i32) -> (i32, i32) {
    %c0_i32 = arith.constant 0 : i32
    %c0_i32_0 = arith.constant 0 : i32
    %c0_i32_1 = arith.constant 0 : i32
    return %c0_i32, %c0_i32_0 : i32, i32
  }
  func.func @transform_4(%arg0: i32) -> (i32, i32) {
    %c0_i32 = arith.constant 0 : i32
    %c0_i32_0 = arith.constant 0 : i32
    %c0_i32_1 = arith.constant 0 : i32
    return %c0_i32, %c0_i32_0 : i32, i32
  }
  func.func @transform_5(%arg0: i32) -> (i32, i32) {
    %c0_i32 = arith.constant 0 : i32
    %c0_i32_0 = arith.constant 0 : i32
    %c0_i32_1 = arith.constant 0 : i32
    return %c0_i32, %c0_i32_0 : i32, i32
  }
  func.func @transform_6(%arg0: i32) -> (i32, i32) {
    %c0_i32 = arith.constant 0 : i32
    %c0_i32_0 = arith.constant 0 : i32
    %c0_i32_1 = arith.constant 0 : i32
    return %c0_i32, %c0_i32_0 : i32, i32
  }
  func.func @transform_7(%arg0: i32) -> (i32, i32, i32) {
    %c0_i32 = arith.constant 0 : i32
    %c0_i32_0 = arith.constant 0 : i32
    %c0_i32_1 = arith.constant 0 : i32
    return %arg0, %c0_i32, %c0_i32_0 : i32, i32, i32
  }
  func.func @transform_8(%arg0: i32) -> (i32, i32, i32) {
    %c0_i32 = arith.constant 0 : i32
    %c0_i32_0 = arith.constant 0 : i32
    %c0_i32_1 = arith.constant 0 : i32
    return %arg0, %c0_i32, %c0_i32_0 : i32, i32, i32
  }
}

</mosaic_0001>

<llo_original>
// kernel: tpu_custom_call.1
$region0: #{tpu_custom_call.1}
  #allocation0 [shape = 'u32[]', space=smem, size = 0x4, offset = 0x4, fixed_abs, tag = 'smem constant byte address 0x4 - core index']
  #allocation1 [shape = 'u32[144,128]{1,0:T(1,128)}', space=vmem, size = 0x12000, scoped, tag = 'internal scratch']
  #allocation2 [shape = 'f32[1,1]{1,0:T(1,128)S(6)}', space=smem, size = 0x200, scoped, tag = 'scoped memory for tpu_custom_call.1']
  %s0 = inlined_call_operand.hbm [shape: f32[8,1,128], index: 0, kind: input, shape index: {}]
  %s1 = inlined_call_operand.hbm [shape: f32[8,8,128], index: 1, kind: input, shape index: {}]
  %s2 = inlined_call_operand.hbm [shape: f32[128,128], index: 2, kind: input, shape index: {}]
  %s3 = inlined_call_operand.hbm [shape: f32[128,128], index: 3, kind: input, shape index: {}]
  %s4 = inlined_call_operand.vmem [shape: f32[1,128], index: 4, kind: input, shape index: {}]
  %s5 = inlined_call_operand.vmem [shape: f32[1,128], index: 5, kind: input, shape index: {}]
  %s6 = inlined_call_operand.<no memory space> [shape: f32[1,1], index: 6, kind: input, shape index: {}]
  %s7 = inlined_call_operand.hbm [shape: f32[8,1,128], index: 7, kind: output, shape index: {0}]
  %s8 = inlined_call_operand.hbm [shape: f32[8,1,8], index: 8, kind: output, shape index: {1}]
  %9 = xla_tuple %s7, %s8
  %s10 = sld [smem:[#allocation0]]
  $region62: #{tpu_custom_call.1} parent=0
    _
  %s12 = ssub.s32 1, %s10
  %s13 = scalar_select 0, %s12, %s10
  %14 = sst [smem:[#allocation2]] %s6
  $region1: #{tpu_custom_call.1} parent=0
    #allocation3 [shape = 'u8[4096]{0}', space=vmem, size = 0x1000, scoped, tag = 'input window, operand 0, single buffered']
    #allocation4 [shape = 's32[1]{0}', space=sflag, size = 0x4, scoped, tag = 'scoped memory for tpu_custom_call.1']
    #allocation5 [shape = 's32[1]{0}', space=sflag, size = 0x4, scoped, tag = 'scoped memory for tpu_custom_call.1']
    #allocation6 [shape = 'u8[32768]{0}', space=vmem, size = 0x8000, scoped, tag = 'input window, operand 1, single buffered']
    #allocation7 [shape = 's32[1]{0}', space=sflag, size = 0x4, scoped, tag = 'scoped memory for tpu_custom_call.1']
    #allocation8 [shape = 'u8[65536]{0}', space=vmem, size = 0x10000, scoped, tag = 'input window, operand 2, single buffered']
    #allocation9 [shape = 'u8[65536]{0}', space=vmem, size = 0x10000, scoped, tag = 'input window, operand 3, single buffered']
    #allocation10 [shape = 's32[1]{0}', space=sflag, size = 0x4, scoped, tag = 'scoped memory for tpu_custom_call.1']
    #allocation11 [shape = 'u8[4096]{0}', space=vmem, size = 0x1000, scoped, tag = 'output window, operand 0, single buffered']
    #allocation12 [shape = 'u8[4096]{0}', space=vmem, size = 0x1000, scoped, tag = 'output window, operand 1, single buffered']
    #allocation13 [shape = 's32[1]{0}', space=sflag, size = 0x4, scoped, tag = 'scoped memory for tpu_custom_call.1']
    %15 = vsyncpa [#allocation4], 0
    %16 = vsyncpa [#allocation7], 0
    %17 = vsyncpa [#allocation10], 0
    %18 = vsyncpa [#allocation5], 0
    %19 = vsyncpa [#allocation13], 0
    // Predicated region
    $region2: #{tpu_custom_call.1} parent=1 // pred_check
      _
    $region3: #{tpu_custom_call.1} parent=1 // pred_check_branch
      %21 = sbr.rel (0) target = $region5
    $region4: #{tpu_custom_call.1} parent=1 // pred_region
      %s23 = ssub.s32 128, 128
      %24 = vsyncadd [#allocation4], %s23
      %s25 = sshll.u32 [#allocation3], 4
      %s26 = int_to_ptr.vmem [resolvable:$true] %s25
      %31 = dma.hbm_to_vmem [thread:$0]  %s0, 128, %s26, [#allocation4], 16, 16, 1
    $region5: #{tpu_custom_call.1} parent=1 // pred_fallthru
      _
    // Predicated region
    $region6: #{tpu_custom_call.1} parent=1 // pred_check
      _
    $region7: #{tpu_custom_call.1} parent=1 // pred_check_branch
      %33 = sbr.rel (0) target = $region9
    $region8: #{tpu_custom_call.1} parent=1 // pred_region
      %s35 = ssub.s32 1024, 1024
      %36 = vsyncadd [#allocation7], %s35
      %s37 = sshll.u32 [#allocation6], 4
      %s38 = int_to_ptr.vmem [resolvable:$true] %s37
      %43 = dma.hbm_to_vmem [thread:$0]  %s1, 1024, %s38, [#allocation7], 128, 128, 8
    $region9: #{tpu_custom_call.1} parent=1 // pred_fallthru
      _
    // Predicated region
    $region10: #{tpu_custom_call.1} parent=1 // pred_check
      _
    $region11: #{tpu_custom_call.1} parent=1 // pred_check_branch
      %45 = sbr.rel (0) target = $region13
    $region12: #{tpu_custom_call.1} parent=1 // pred_region
      %s47 = ssub.s32 2048, 2048
      %48 = vsyncadd [#allocation7], %s47
      %s49 = sshll.u32 [#allocation8], 4
      %s50 = int_to_ptr.vmem [resolvable:$true] %s49
      %55 = dma.hbm_to_vmem [thread:$0]  %s2, 2048, %s50, [#allocation7], 128, 128, 8
    $region13: #{tpu_custom_call.1} parent=1 // pred_fallthru
      _
    // Predicated region
    $region14: #{tpu_custom_call.1} parent=1 // pred_check
      _
    $region15: #{tpu_custom_call.1} parent=1 // pred_check_branch
      %57 = sbr.rel (0) target = $region17
    $region16: #{tpu_custom_call.1} parent=1 // pred_region
      %s59 = ssub.s32 2048, 2048
      %60 = vsyncadd [#allocation10], %s59
      %s61 = sshll.u32 [#allocation9], 4
      %s62 = int_to_ptr.vmem [resolvable:$true] %s61
      %67 = dma.hbm_to_vmem [thread:$0]  %s3, 2048, %s62, [#allocation10], 128, 128, 8
    $region17: #{tpu_custom_call.1} parent=1 // pred_fallthru
      _
    // Predicated region
    $region18: #{tpu_custom_call.1} parent=1 // pred_check
      _
    $region19: #{tpu_custom_call.1} parent=1 // pred_check_branch
      %69 = sbr.rel (0) target = $region21
    $region20: #{tpu_custom_call.1} parent=1 // pred_region
      _
    $region21: #{tpu_custom_call.1} parent=1 // pred_fallthru
      _
    // Predicated region
    $region22: #{tpu_custom_call.1} parent=1 // pred_check
      _
    $region23: #{tpu_custom_call.1} parent=1 // pred_check_branch
      %71 = sbr.rel (0) target = $region25
    $region24: #{tpu_custom_call.1} parent=1 // pred_region
      _
    $region25: #{tpu_custom_call.1} parent=1 // pred_fallthru
      _
    // Predicated region
    $region26: #{tpu_custom_call.1} parent=1 // pred_check
      _
    $region27: #{tpu_custom_call.1} parent=1 // pred_check_branch
      %73 = sbr.rel (0) target = $region29
    $region28: #{tpu_custom_call.1} parent=1 // pred_region
      _
    $region29: #{tpu_custom_call.1} parent=1 // pred_fallthru
      _
    // Predicated region
    $region30: #{tpu_custom_call.1} parent=1 // pred_check
      _
    $region31: #{tpu_custom_call.1} parent=1 // pred_check_branch
      %75 = sbr.rel (0) target = $region33
    $region32: #{tpu_custom_call.1} parent=1 // pred_region
      %76 = dma.done [#allocation4], 128
    $region33: #{tpu_custom_call.1} parent=1 // pred_fallthru
      _
    // Predicated region
    $region34: #{tpu_custom_call.1} parent=1 // pred_check
      _
    $region35: #{tpu_custom_call.1} parent=1 // pred_check_branch
      %78 = sbr.rel (0) target = $region37
    $region36: #{tpu_custom_call.1} parent=1 // pred_region
      %79 = dma.done [#allocation7], 1024
    $region37: #{tpu_custom_call.1} parent=1 // pred_fallthru
      _
    // Predicated region
    $region38: #{tpu_custom_call.1} parent=1 // pred_check
      _
    $region39: #{tpu_custom_call.1} parent=1 // pred_check_branch
      %81 = sbr.rel (0) target = $region41
    $region40: #{tpu_custom_call.1} parent=1 // pred_region
      %82 = dma.done [#allocation7], 2048
    $region41: #{tpu_custom_call.1} parent=1 // pred_fallthru
      _
    // Predicated region
    $region42: #{tpu_custom_call.1} parent=1 // pred_check
      _
    $region43: #{tpu_custom_call.1} parent=1 // pred_check_branch
      %84 = sbr.rel (0) target = $region45
    $region44: #{tpu_custom_call.1} parent=1 // pred_region
      %85 = dma.done [#allocation10], 2048
    $region45: #{tpu_custom_call.1} parent=1 // pred_fallthru
      _
    %v86 = vld [vmem:[#allocation3] sm:$0x1]
    %v87 = vld [vmem:[#allocation3 + $0x1] sm:$0x1]
    %v88 = vld [vmem:[#allocation3 + $0x2] sm:$0x1]
    %v89 = vld [vmem:[#allocation3 + $0x3] sm:$0x1]
    %v90 = vld [vmem:[#allocation3 + $0x4] sm:$0x1]
    %v91 = vld [vmem:[#allocation3 + $0x5] sm:$0x1]
    %v92 = vld [vmem:[#allocation3 + $0x6] sm:$0x1]
    %v93 = vld [vmem:[#allocation3 + $0x7] sm:$0x1]
    %v94 = vld [vmem:[#allocation6] sm:$0xff]
    %v95 = vld [vmem:[#allocation6 + $0x8] sm:$0xff]
    %v96 = vld [vmem:[#allocation6 + $0x10] sm:$0xff]
    %v97 = vld [vmem:[#allocation6 + $0x18] sm:$0xff]
    %v98 = vld [vmem:[#allocation6 + $0x20] sm:$0xff]
    %v99 = vld [vmem:[#allocation6 + $0x28] sm:$0xff]
    %v100 = vld [vmem:[#allocation6 + $0x30] sm:$0xff]
    %v101 = vld [vmem:[#allocation6 + $0x38] sm:$0xff]
    %v102 = vld [vmem:[#allocation8] sm:$0xff]
    %v103 = vld [vmem:[#allocation8 + $0x8] sm:$0xff]
    %v104 = vld [vmem:[#allocation8 + $0x10] sm:$0xff]
    %v105 = vld [vmem:[#allocation8 + $0x18] sm:$0xff]
    %v106 = vld [vmem:[#allocation8 + $0x20] sm:$0xff]
    %v107 = vld [vmem:[#allocation8 + $0x28] sm:$0xff]
    %v108 = vld [vmem:[#allocation8 + $0x30] sm:$0xff]
    %v109 = vld [vmem:[#allocation8 + $0x38] sm:$0xff]
    %v110 = vld [vmem:[#allocation8 + $0x40] sm:$0xff]
    %v111 = vld [vmem:[#allocation8 + $0x48] sm:$0xff]
    %v112 = vld [vmem:[#allocation8 + $0x50] sm:$0xff]
    %v113 = vld [vmem:[#allocation8 + $0x58] sm:$0xff]
    %v114 = vld [vmem:[#allocation8 + $0x60] sm:$0xff]
    %v115 = vld [vmem:[#allocation8 + $0x68] sm:$0xff]
    %v116 = vld [vmem:[#allocation8 + $0x70] sm:$0xff]
    %v117 = vld [vmem:[#allocation8 + $0x78] sm:$0xff]
    %v118 = vld [vmem:[#allocation9] sm:$0xff]
    %v119 = vld [vmem:[#allocation9 + $0x8] sm:$0xff]
    %v120 = vld [vmem:[#allocation9 + $0x10] sm:$0xff]
    %v121 = vld [vmem:[#allocation9 + $0x18] sm:$0xff]
    %v122 = vld [vmem:[#allocation9 + $0x20] sm:$0xff]
    %v123 = vld [vmem:[#allocation9 + $0x28] sm:$0xff]
    %v124 = vld [vmem:[#allocation9 + $0x30] sm:$0xff]
    %v125 = vld [vmem:[#allocation9 + $0x38] sm:$0xff]
    %v126 = vld [vmem:[#allocation9 + $0x40] sm:$0xff]
    %v127 = vld [vmem:[#allocation9 + $0x48] sm:$0xff]
    %v128 = vld [vmem:[#allocation9 + $0x50] sm:$0xff]
    %v129 = vld [vmem:[#allocation9 + $0x58] sm:$0xff]
    %v130 = vld [vmem:[#allocation9 + $0x60] sm:$0xff]
    %v131 = vld [vmem:[#allocation9 + $0x68] sm:$0xff]
    %v132 = vld [vmem:[#allocation9 + $0x70] sm:$0xff]
    %v133 = vld [vmem:[#allocation9 + $0x78] sm:$0xff]
    %134 = vmatprep.subr.mxu0 0.0
    %135 = vmatpush1.msra.mxu0 %v133
    %136 = vmatprep.subr.mxu0 0.0
    %137 = vmatpush1.msra.mxu0 %v132
    %138 = vmatprep.subr.mxu0 0.0
    %139 = vmatpush1.msra.mxu0 %v131
    %140 = vmatprep.subr.mxu0 0.0
    %141 = vmatpush1.msra.mxu0 %v130
    %142 = vmatprep.subr.mxu0 0.0
    %143 = vmatpush1.msra.mxu0 %v129
    %144 = vmatprep.subr.mxu0 0.0
    %145 = vmatpush1.msra.mxu0 %v128
    %146 = vmatprep.subr.mxu0 0.0
    %147 = vmatpush1.msra.mxu0 %v127
    %148 = vmatprep.subr.mxu0 0.0
    %149 = vmatpush1.msra.mxu0 %v126
    %150 = vmatprep.subr.mxu0 0.0
    %151 = vmatpush1.msra.mxu0 %v125
    %152 = vmatprep.subr.mxu0 0.0
    %153 = vmatpush1.msra.mxu0 %v124
    %154 = vmatprep.subr.mxu0 0.0
    %155 = vmatpush1.msra.mxu0 %v123
    %156 = vmatprep.subr.mxu0 0.0
    %157 = vmatpush1.msra.mxu0 %v122
    %158 = vmatprep.subr.mxu0 0.0
    %159 = vmatpush1.msra.mxu0 %v121
    %160 = vmatprep.subr.mxu0 0.0
    %161 = vmatpush1.msra.mxu0 %v120
    %162 = vmatprep.subr.mxu0 0.0
    %163 = vmatpush1.msra.mxu0 %v119
    %164 = vmatprep.subr.mxu0 0.0
    %165 = vmatpush1.msra.mxu0 %v118
    %166 = vmatprep.subr.mxu0 0.0
    %167 = vmatpush2.msra.mxu0 0.0
    %168 = vmatprep.subr.mxu0 0.0
    %169 = vmatpush2.msra.mxu0 0.0
    %170 = vmatprep.subr.mxu0 0.0
    %171 = vmatpush2.msra.mxu0 0.0
    %172 = vmatprep.subr.mxu0 0.0
    %173 = vmatpush2.msra.mxu0 0.0
    %174 = vmatprep.subr.mxu0 0.0
    %175 = vmatpush2.msra.mxu0 0.0
    %176 = vmatprep.subr.mxu0 0.0
    %177 = vmatpush2.msra.mxu0 0.0
    %178 = vmatprep.subr.mxu0 0.0
    %179 = vmatpush2.msra.mxu0 0.0
    %180 = vmatprep.subr.mxu0 0.0
    %181 = vmatpush2.msra.mxu0 0.0
    %182 = vmatprep.subr.mxu0 0.0
    %183 = vmatpush2.msra.mxu0 0.0
    %184 = vmatprep.subr.mxu0 0.0
    %185 = vmatpush2.msra.mxu0 0.0
    %186 = vmatprep.subr.mxu0 0.0
    %187 = vmatpush2.msra.mxu0 0.0
    %188 = vmatprep.subr.mxu0 0.0
    %189 = vmatpush2.msra.mxu0 0.0
    %190 = vmatprep.subr.mxu0 0.0
    %191 = vmatpush2.msra.mxu0 0.0
    %192 = vmatprep.subr.mxu0 0.0
    %193 = vmatpush2.msra.mxu0 0.0
    %194 = vmatprep.subr.mxu0 0.0
    %195 = vmatpush2.msra.mxu0 0.0
    %196 = vmatprep.subr.mxu0 0.0
    %197 = vmatpush2.msra.mxu0 0.0
    %198 = vmatprep.mubr.f32.mxu0 0.0
    %199 = vmatmul.mubr.f32.gmra.mxu0 %v94
    %v200 = vpop.f32.mrf.mxu0
    %v201 = vadd.f32 0.0, %v200
    %v202 = vpop.f32.mrf.mxu0
    %203 = vmatprep.mubr.f32.mxu0 0.0
    %204 = vmatmul.mubr.f32.gmra.mxu0 %v95
    %v205 = vpop.f32.mrf.mxu0
    %v206 = vadd.f32 0.0, %v205
    %v207 = vpop.f32.mrf.mxu0
    %208 = vmatprep.mubr.f32.mxu0 0.0
    %209 = vmatmul.mubr.f32.gmra.mxu0 %v96
    %v210 = vpop.f32.mrf.mxu0
    %v211 = vadd.f32 0.0, %v210
    %v212 = vpop.f32.mrf.mxu0
    %213 = vmatprep.mubr.f32.mxu0 0.0
    %214 = vmatmul.mubr.f32.gmra.mxu0 %v97
    %v215 = vpop.f32.mrf.mxu0
    %v216 = vadd.f32 0.0, %v215
    %v217 = vpop.f32.mrf.mxu0
    %218 = vmatprep.mubr.f32.mxu0 0.0
    %219 = vmatmul.mubr.f32.gmra.mxu0 %v98
    %v220 = vpop.f32.mrf.mxu0
    %v221 = vadd.f32 0.0, %v220
    %v222 = vpop.f32.mrf.mxu0
    %223 = vmatprep.mubr.f32.mxu0 0.0
    %224 = vmatmul.mubr.f32.gmra.mxu0 %v99
    %v225 = vpop.f32.mrf.mxu0
    %v226 = vadd.f32 0.0, %v225
    %v227 = vpop.f32.mrf.mxu0
    %228 = vmatprep.mubr.f32.mxu0 0.0
    %229 = vmatmul.mubr.f32.gmra.mxu0 %v100
    %v230 = vpop.f32.mrf.mxu0
    %v231 = vadd.f32 0.0, %v230
    %v232 = vpop.f32.mrf.mxu0
    %233 = vmatprep.mubr.f32.mxu0 0.0
    %234 = vmatmul.mubr.f32.gmra.mxu0 %v101
    %v235 = vpop.f32.mrf.mxu0
    %v236 = vadd.f32 0.0, %v235
    %v237 = vpop.f32.mrf.mxu0
    %238 = vdwg.mxu0
    %v239 = vld [vmem:[%s4] sm:$0x1]
    %v241 = vlaneseq
    %v242 = vshrl.u32 %v241, 7
    %v243 = vsub.s32 0, %v242
    %v244 = vrot.slane %v239, %v243
    %v254 = vcombine.low %v86, %v87
    %v255 = vcombine.low %v88, %v89
    %v256 = vcombine.low %v90, %v91
    %v257 = vcombine.low %v92, %v93
    %v259 = vunpack.c.l.s4 1966171168
    %v260 = vunpack.c.0.s8 %v259
    %v261 = vlaneseq
    %v262 = vshrl.u32 %v261, 7
    %v263 = vsub.s32 %v260, %v262
    %v264 = vrot.slane %v254, %v263
    %v266 = vunpack.c.l.s4 1966171168
    %v267 = vunpack.c.0.s8 %v266
    %v268 = vlaneseq
    %v269 = vshrl.u32 %v268, 7
    %v270 = vsub.s32 %v267, %v269
    %v271 = vrot.slane %v255, %v270
    %v273 = vunpack.c.l.s4 1966171168
    %v274 = vunpack.c.0.s8 %v273
    %v275 = vlaneseq
    %v276 = vshrl.u32 %v275, 7
    %v277 = vsub.s32 %v274, %v276
    %v278 = vrot.slane %v256, %v277
    %v280 = vunpack.c.l.s4 1966171168
    %v281 = vunpack.c.0.s8 %v280
    %v282 = vlaneseq
    %v283 = vshrl.u32 %v282, 7
    %v284 = vsub.s32 %v281, %v283
    %v285 = vrot.slane %v257, %v284
    %v286 = vcombine.low %v264, %v271
    %v287 = vcombine.low %v278, %v285
    %v289 = vunpack.c.l.s4 1966171168
    %v290 = vunpack.c.0.s8 %v289
    %v291 = vlaneseq
    %v292 = vshrl.u32 %v291, 7
    %v293 = vsub.s32 %v290, %v292
    %v294 = vrot.slane %v286, %v293
    %v296 = vunpack.c.l.s4 1966171168
    %v297 = vunpack.c.0.s8 %v296
    %v298 = vlaneseq
    %v299 = vshrl.u32 %v298, 7
    %v300 = vsub.s32 %v297, %v299
    %v301 = vrot.slane %v287, %v300
    %v302 = vcombine.low %v294, %v301
    %304 = vmatprep.subr.mxu0 0.0
    %305 = vmatpush1.msra.mxu0 %v117
    %306 = vmatprep.subr.mxu0 0.0
    %307 = vmatpush1.msra.mxu0 %v116
    %308 = vmatprep.subr.mxu0 0.0
    %309 = vmatpush1.msra.mxu0 %v115
    %310 = vmatprep.subr.mxu0 0.0
    %311 = vmatpush1.msra.mxu0 %v114
    %312 = vmatprep.subr.mxu0 0.0
    %313 = vmatpush1.msra.mxu0 %v113
    %314 = vmatprep.subr.mxu0 0.0
    %315 = vmatpush1.msra.mxu0 %v112
    %316 = vmatprep.subr.mxu0 0.0
    %317 = vmatpush1.msra.mxu0 %v111
    %318 = vmatprep.subr.mxu0 0.0
    %319 = vmatpush1.msra.mxu0 %v110
    %320 = vmatprep.subr.mxu0 0.0
    %321 = vmatpush1.msra.mxu0 %v109
    %322 = vmatprep.subr.mxu0 0.0
    %323 = vmatpush1.msra.mxu0 %v108
    %324 = vmatprep.subr.mxu0 0.0
    %325 = vmatpush1.msra.mxu0 %v107
    %326 = vmatprep.subr.mxu0 0.0
    %327 = vmatpush1.msra.mxu0 %v106
    %328 = vmatprep.subr.mxu0 0.0
    %329 = vmatpush1.msra.mxu0 %v105
    %330 = vmatprep.subr.mxu0 0.0
    %331 = vmatpush1.msra.mxu0 %v104
    %332 = vmatprep.subr.mxu0 0.0
    %333 = vmatpush1.msra.mxu0 %v103
    %334 = vmatprep.subr.mxu0 0.0
    %335 = vmatpush1.msra.mxu0 %v102
    %336 = vmatprep.subr.mxu0 0.0
    %337 = vmatpush2.msra.mxu0 0.0
    %338 = vmatprep.subr.mxu0 0.0
    %339 = vmatpush2.msra.mxu0 0.0
    %340 = vmatprep.subr.mxu0 0.0
    %341 = vmatpush2.msra.mxu0 0.0
    %342 = vmatprep.subr.mxu0 0.0
    %343 = vmatpush2.msra.mxu0 0.0
    %344 = vmatprep.subr.mxu0 0.0
    %345 = vmatpush2.msra.mxu0 0.0
    %346 = vmatprep.subr.mxu0 0.0
    %347 = vmatpush2.msra.mxu0 0.0
    %348 = vmatprep.subr.mxu0 0.0
    %349 = vmatpush2.msra.mxu0 0.0
    %350 = vmatprep.subr.mxu0 0.0
    %351 = vmatpush2.msra.mxu0 0.0
    %352 = vmatprep.subr.mxu0 0.0
    %353 = vmatpush2.msra.mxu0 0.0
    %354 = vmatprep.subr.mxu0 0.0
    %355 = vmatpush2.msra.mxu0 0.0
    %356 = vmatprep.subr.mxu0 0.0
    %357 = vmatpush2.msra.mxu0 0.0
    %358 = vmatprep.subr.mxu0 0.0
    %359 = vmatpush2.msra.mxu0 0.0
    %360 = vmatprep.subr.mxu0 0.0
    %361 = vmatpush2.msra.mxu0 0.0
    %362 = vmatprep.subr.mxu0 0.0
    %363 = vmatpush2.msra.mxu0 0.0
    %364 = vmatprep.subr.mxu0 0.0
    %365 = vmatpush2.msra.mxu0 0.0
    %366 = vmatprep.subr.mxu0 0.0
    %367 = vmatpush2.msra.mxu0 0.0
    %368 = vmatprep.mubr.f32.mxu0 0.0
    %369 = vmatmul.mubr.f32.gmra.mxu0 %v302
    %v370 = vpop.f32.mrf.mxu0
    %v371 = vadd.f32 %v244, %v370
    %v372 = vpop.f32.mrf.mxu0
    %373 = vdwg.mxu0
    %v375 = vcombine.high %v371, %v371
    %v377 = vunpack.c.l.s4 1966171168
    %v378 = vunpack.c.0.s8 %v377
    %v379 = vlaneseq
    %v380 = vshrl.u32 %v379, 7
    %v381 = vsub.s32 %v378, %v380
    %v382 = vrot.slane %v371, %v381
    %v384 = vunpack.c.l.s4 1966171168
    %v385 = vunpack.c.0.s8 %v384
    %v386 = vlaneseq
    %v387 = vshrl.u32 %v386, 7
    %v388 = vsub.s32 %v385, %v387
    %v389 = vrot.slane %v375, %v388
    %v390 = vcombine.high %v382, %v382
    %v391 = vcombine.high %v389, %v389
    %v393 = vunpack.c.l.s4 1966171168
    %v394 = vunpack.c.0.s8 %v393
    %v395 = vlaneseq
    %v396 = vshrl.u32 %v395, 7
    %v397 = vsub.s32 %v394, %v396
    %v398 = vrot.slane %v382, %v397
    %v400 = vunpack.c.l.s4 1966171168
    %v401 = vunpack.c.0.s8 %v400
    %v402 = vlaneseq
    %v403 = vshrl.u32 %v402, 7
    %v404 = vsub.s32 %v401, %v403
    %v405 = vrot.slane %v389, %v404
    %v407 = vunpack.c.l.s4 1966171168
    %v408 = vunpack.c.0.s8 %v407
    %v409 = vlaneseq
    %v410 = vshrl.u32 %v409, 7
    %v411 = vsub.s32 %v408, %v410
    %v412 = vrot.slane %v390, %v411
    %v414 = vunpack.c.l.s4 1966171168
    %v415 = vunpack.c.0.s8 %v414
    %v416 = vlaneseq
    %v417 = vshrl.u32 %v416, 7
    %v418 = vsub.s32 %v415, %v417
    %v419 = vrot.slane %v391, %v418
    %v420 = vcombine.high %v398, %v398
    %v421 = vcombine.high %v405, %v405
    %v422 = vcombine.high %v412, %v412
    %v423 = vcombine.high %v419, %v419
    %v424 = vlaneseq
    %v425 = vshrl.u32 %v424, 7
    %v426 = vsub.s32 0, %v425
    %v427 = vrot.slane %v398, %v426
    %v428 = vlaneseq
    %v429 = vshrl.u32 %v428, 7
    %v430 = vsub.s32 0, %v429
    %v431 = vrot.slane %v412, %v430
    %v432 = vlaneseq
    %v433 = vshrl.u32 %v432, 7
    %v434 = vsub.s32 0, %v433
    %v435 = vrot.slane %v420, %v434
    %v436 = vlaneseq
    %v437 = vshrl.u32 %v436, 7
    %v438 = vsub.s32 0, %v437
    %v439 = vrot.slane %v422, %v438
    %v440 = vlaneseq
    %v441 = vshrl.u32 %v440, 7
    %v442 = vsub.s32 0, %v441
    %v443 = vrot.slane %v405, %v442
    %v444 = vlaneseq
    %v445 = vshrl.u32 %v444, 7
    %v446 = vsub.s32 0, %v445
    %v447 = vrot.slane %v419, %v446
    %v448 = vlaneseq
    %v449 = vshrl.u32 %v448, 7
    %v450 = vsub.s32 0, %v449
    %v451 = vrot.slane %v421, %v450
    %v452 = vlaneseq
    %v453 = vshrl.u32 %v452, 7
    %v454 = vsub.s32 0, %v453
    %v455 = vrot.slane %v423, %v454
    %v464 = vadd.f32 %v201, %v427
    %v465 = vadd.f32 %v206, %v431
    %v466 = vadd.f32 %v211, %v435
    %v467 = vadd.f32 %v216, %v439
    %v468 = vadd.f32 %v221, %v443
    %v469 = vadd.f32 %v226, %v447
    %v470 = vadd.f32 %v231, %v451
    %v471 = vadd.f32 %v236, %v455
    %v472 = vtanh.pop %v464
    %v473 = vtanh.pop %v465
    %v474 = vtanh.pop %v466
    %v475 = vtanh.pop %v467
    %v476 = vtanh.pop %v468
    %v477 = vtanh.pop %v469
    %v478 = vtanh.pop %v470
    %v479 = vtanh.pop %v471
    %v480 = vld [vmem:[%s5] sm:$0x1]
    %v482 = vlaneseq
    %v483 = vshrl.u32 %v482, 7
    %v484 = vsub.s32 0, %v483
    %v485 = vrot.slane %v480, %v484
    %v487 = vmul.f32 %v472, %v485
    %v488 = vmul.f32 %v473, %v485
    %v489 = vmul.f32 %v474, %v485
    %v490 = vmul.f32 %v475, %v485
    %v491 = vmul.f32 %v476, %v485
    %v492 = vmul.f32 %v477, %v485
    %v493 = vmul.f32 %v478, %v485
    %v494 = vmul.f32 %v479, %v485
    %495 = vadd.xlane.f32.xlu0 %v487
    %v496 = vpop.xlane.xlu0 %495
    %497 = vadd.xlane.f32.xlu0 %v488
    %v498 = vpop.xlane.xlu0 %497
    %499 = vadd.xlane.f32.xlu0 %v489
    %v500 = vpop.xlane.xlu0 %499
    %501 = vadd.xlane.f32.xlu0 %v490
    %v502 = vpop.xlane.xlu0 %501
    %503 = vadd.xlane.f32.xlu0 %v491
    %v504 = vpop.xlane.xlu0 %503
    %505 = vadd.xlane.f32.xlu0 %v492
    %v506 = vpop.xlane.xlu0 %505
    %507 = vadd.xlane.f32.xlu0 %v493
    %v508 = vpop.xlane.xlu0 %507
    %509 = vadd.xlane.f32.xlu0 %v494
    %v510 = vpop.xlane.xlu0 %509
    %s511 = sld [smem:[#allocation2]]
    %v512 = vstv %s511
    %v513 = vadd.f32 %v496, %v512
    %v514 = vadd.f32 %v498, %v512
    %v515 = vadd.f32 %v500, %v512
    %v516 = vadd.f32 %v502, %v512
    %v517 = vadd.f32 %v504, %v512
    %v518 = vadd.f32 %v506, %v512
    %v519 = vadd.f32 %v508, %v512
    %v520 = vadd.f32 %v510, %v512
    %v529 = vlaneseq
    %v530 = vand.u32 %v529, 127
    %v531 = vlaneseq
    %v532 = vshrl.u32 %v531, 7
    %v533 = vsub.s32 %v530, %v532
    %v534 = vrot.slane %v513, %v533
    %v535 = vlaneseq
    %v536 = vshrl.u32 %v535, 7
    %v537 = vsub.s32 %v530, %v536
    %v538 = vrot.slane %v514, %v537
    %v539 = vlaneseq
    %v540 = vshrl.u32 %v539, 7
    %v541 = vsub.s32 %v530, %v540
    %v542 = vrot.slane %v515, %v541
    %v543 = vlaneseq
    %v544 = vshrl.u32 %v543, 7
    %v545 = vsub.s32 %v530, %v544
    %v546 = vrot.slane %v516, %v545
    %v547 = vlaneseq
    %v548 = vshrl.u32 %v547, 7
    %v549 = vsub.s32 %v530, %v548
    %v550 = vrot.slane %v517, %v549
    %v551 = vlaneseq
    %v552 = vshrl.u32 %v551, 7
    %v553 = vsub.s32 %v530, %v552
    %v554 = vrot.slane %v518, %v553
    %v555 = vlaneseq
    %v556 = vshrl.u32 %v555, 7
    %v557 = vsub.s32 %v530, %v556
    %v558 = vrot.slane %v519, %v557
    %v559 = vlaneseq
    %v560 = vshrl.u32 %v559, 7
    %v561 = vsub.s32 %v530, %v560
    %v562 = vrot.slane %v520, %v561
    %vm563 = vcmask 1041409
    %v564 = vsel %vm563, %v538, %v534
    %vm565 = vcmask 1042434
    %v566 = vsel %vm565, %v542, %v564
    %vm567 = vcmask 1043459
    %v568 = vsel %vm567, %v546, %v566
    %vm569 = vcmask 1044484
    %v570 = vsel %vm569, %v550, %v568
    %vm571 = vcmask 1045509
    %v572 = vsel %vm571, %v554, %v570
    %vm573 = vcmask 1046534
    %v574 = vsel %vm573, %v558, %v572
    %vm575 = vcmask 1047559
    %v576 = vsel %vm575, %v562, %v574
    %vm578 = vcmask 64512
    %v579 = vsel %vm578, %v576, -inf
    %580 = vmax.xlane.f32.xlu0 %v579
    %v581 = vpop.xlane.xlu0 %580
    %v583 = vlaneseq
    %v584 = vshrl.u32 %v583, 7
    %v585 = vsub.s32 0, %v584
    %v586 = vrot.slane %v581, %v585
    %v587 = vlaneseq
    %v588 = vshrl.u32 %v587, 7
    %v589 = vsub.s32 1, %v588
    %v590 = vrot.slane %v581, %v589
    %v591 = vlaneseq
    %v592 = vshrl.u32 %v591, 7
    %v593 = vsub.s32 2, %v592
    %v594 = vrot.slane %v581, %v593
    %v595 = vlaneseq
    %v596 = vshrl.u32 %v595, 7
    %v597 = vsub.s32 3, %v596
    %v598 = vrot.slane %v581, %v597
    %v599 = vlaneseq
    %v600 = vshrl.u32 %v599, 7
    %v601 = vsub.s32 4, %v600
    %v602 = vrot.slane %v581, %v601
    %v603 = vlaneseq
    %v604 = vshrl.u32 %v603, 7
    %v605 = vsub.s32 5, %v604
    %v606 = vrot.slane %v581, %v605
    %v607 = vlaneseq
    %v608 = vshrl.u32 %v607, 7
    %v609 = vsub.s32 6, %v608
    %v610 = vrot.slane %v581, %v609
    %v611 = vlaneseq
    %v612 = vshrl.u32 %v611, 7
    %v613 = vsub.s32 7, %v612
    %v614 = vrot.slane %v581, %v613
    %v623 = vsub.f32 %v513, %v586
    %v624 = vsub.f32 %v514, %v590
    %v625 = vsub.f32 %v515, %v594
    %v626 = vsub.f32 %v516, %v598
    %v627 = vsub.f32 %v517, %v602
    %v628 = vsub.f32 %v518, %v606
    %v629 = vsub.f32 %v519, %v610
    %v630 = vsub.f32 %v520, %v614
    %v631 = vmul.f32 %v623, 1.442695
    %v632 = vpow.pop %v631
    %v633 = vmul.f32 %v624, 1.442695
    %v634 = vpow.pop %v633
    %v635 = vmul.f32 %v625, 1.442695
    %v636 = vpow.pop %v635
    %v637 = vmul.f32 %v626, 1.442695
    %v638 = vpow.pop %v637
    %v639 = vmul.f32 %v627, 1.442695
    %v640 = vpow.pop %v639
    %v641 = vmul.f32 %v628, 1.442695
    %v642 = vpow.pop %v641
    %v643 = vmul.f32 %v629, 1.442695
    %v644 = vpow.pop %v643
    %v645 = vmul.f32 %v630, 1.442695
    %v646 = vpow.pop %v645
    %655 = vset.pattern.permute.xlu0 0
    %656 = vperm.xlu0 %655, %v632
    %v657 = vpop.permute.xlu0 %656
    %658 = vset.pattern.permute.xlu0 0
    %659 = vperm.xlu0 %658, %v634
    %v660 = vpop.permute.xlu0 %659
    %661 = vset.pattern.permute.xlu0 0
    %662 = vperm.xlu0 %661, %v636
    %v663 = vpop.permute.xlu0 %662
    %664 = vset.pattern.permute.xlu0 0
    %665 = vperm.xlu0 %664, %v638
    %v666 = vpop.permute.xlu0 %665
    %667 = vset.pattern.permute.xlu0 0
    %668 = vperm.xlu0 %667, %v640
    %v669 = vpop.permute.xlu0 %668
    %670 = vset.pattern.permute.xlu0 0
    %671 = vperm.xlu0 %670, %v642
    %v672 = vpop.permute.xlu0 %671
    %673 = vset.pattern.permute.xlu0 0
    %674 = vperm.xlu0 %673, %v644
    %v675 = vpop.permute.xlu0 %674
    %676 = vset.pattern.permute.xlu0 0
    %677 = vperm.xlu0 %676, %v646
    %v678 = vpop.permute.xlu0 %677
    %v679 = vlaneseq
    %v680 = vshrl.u32 %v679, 7
    %v681 = vsub.s32 %v530, %v680
    %v682 = vrot.slane %v657, %v681
    %v683 = vlaneseq
    %v684 = vshrl.u32 %v683, 7
    %v685 = vsub.s32 %v530, %v684
    %v686 = vrot.slane %v660, %v685
    %v687 = vlaneseq
    %v688 = vshrl.u32 %v687, 7
    %v689 = vsub.s32 %v530, %v688
    %v690 = vrot.slane %v663, %v689
    %v691 = vlaneseq
    %v692 = vshrl.u32 %v691, 7
    %v693 = vsub.s32 %v530, %v692
    %v694 = vrot.slane %v666, %v693
    %v695 = vlaneseq
    %v696 = vshrl.u32 %v695, 7
    %v697 = vsub.s32 %v530, %v696
    %v698 = vrot.slane %v669, %v697
    %v699 = vlaneseq
    %v700 = vshrl.u32 %v699, 7
    %v701 = vsub.s32 %v530, %v700
    %v702 = vrot.slane %v672, %v701
    %v703 = vlaneseq
    %v704 = vshrl.u32 %v703, 7
    %v705 = vsub.s32 %v530, %v704
    %v706 = vrot.slane %v675, %v705
    %v707 = vlaneseq
    %v708 = vshrl.u32 %v707, 7
    %v709 = vsub.s32 %v530, %v708
    %v710 = vrot.slane %v678, %v709
    %v711 = vsel %vm563, %v686, %v682
    %v712 = vsel %vm565, %v690, %v711
    %v713 = vsel %vm567, %v694, %v712
    %v714 = vsel %vm569, %v698, %v713
    %v715 = vsel %vm571, %v702, %v714
    %v716 = vsel %vm573, %v706, %v715
    %v717 = vsel %vm575, %v710, %v716
    %v719 = vsel %vm578, %v717, 0.0
    %720 = vadd.xlane.f32.xlu0 %v719
    %v721 = vpop.xlane.xlu0 %720
    %v722 = vrcp.pop %v721
    %v724 = vlaneseq
    %v725 = vshrl.u32 %v724, 7
    %v726 = vsub.s32 0, %v725
    %v727 = vrot.slane %v722, %v726
    %v728 = vlaneseq
    %v729 = vshrl.u32 %v728, 7
    %v730 = vsub.s32 1, %v729
    %v731 = vrot.slane %v722, %v730
    %v732 = vlaneseq
    %v733 = vshrl.u32 %v732, 7
    %v734 = vsub.s32 2, %v733
    %v735 = vrot.slane %v722, %v734
    %v736 = vlaneseq
    %v737 = vshrl.u32 %v736, 7
    %v738 = vsub.s32 3, %v737
    %v739 = vrot.slane %v722, %v738
    %v740 = vlaneseq
    %v741 = vshrl.u32 %v740, 7
    %v742 = vsub.s32 4, %v741
    %v743 = vrot.slane %v722, %v742
    %v744 = vlaneseq
    %v745 = vshrl.u32 %v744, 7
    %v746 = vsub.s32 5, %v745
    %v747 = vrot.slane %v722, %v746
    %v748 = vlaneseq
    %v749 = vshrl.u32 %v748, 7
    %v750 = vsub.s32 6, %v749
    %v751 = vrot.slane %v722, %v750
    %v752 = vlaneseq
    %v753 = vshrl.u32 %v752, 7
    %v754 = vsub.s32 7, %v753
    %v755 = vrot.slane %v722, %v754
    %v764 = vmul.f32 %v632, %v727
    %v765 = vmul.f32 %v634, %v731
    %v766 = vmul.f32 %v636, %v735
    %v767 = vmul.f32 %v638, %v739
    %v768 = vmul.f32 %v640, %v743
    %v769 = vmul.f32 %v642, %v747
    %v770 = vmul.f32 %v644, %v751
    %v771 = vmul.f32 %v646, %v755
    %773 = vset.pattern.permute.xlu0 0
    %774 = vperm.xlu0 %773, %v764
    %v775 = vpop.permute.xlu0 %774
    %778 = vset.pattern.permute.xlu0 0
    %779 = vperm.xlu0 %778, %v765
    %v780 = vpop.permute.xlu0 %779
    %783 = vset.pattern.permute.xlu0 0
    %784 = vperm.xlu0 %783, %v766
    %v785 = vpop.permute.xlu0 %784
    %788 = vset.pattern.permute.xlu0 0
    %789 = vperm.xlu0 %788, %v767
    %v790 = vpop.permute.xlu0 %789
    %793 = vset.pattern.permute.xlu0 0
    %794 = vperm.xlu0 %793, %v768
    %v795 = vpop.permute.xlu0 %794
    %798 = vset.pattern.permute.xlu0 0
    %799 = vperm.xlu0 %798, %v769
    %v800 = vpop.permute.xlu0 %799
    %803 = vset.pattern.permute.xlu0 0
    %804 = vperm.xlu0 %803, %v770
    %v805 = vpop.permute.xlu0 %804
    %808 = vset.pattern.permute.xlu0 0
    %809 = vperm.xlu0 %808, %v771
    %v810 = vpop.permute.xlu0 %809
    %v812 = vmul.f32 %v775, %v94
    %v813 = vmul.f32 %v780, %v95
    %v814 = vmul.f32 %v785, %v96
    %v815 = vmul.f32 %v790, %v97
    %v816 = vmul.f32 %v795, %v98
    %v817 = vmul.f32 %v800, %v99
    %v818 = vmul.f32 %v805, %v100
    %v819 = vmul.f32 %v810, %v101
    %v820 = vrot.slane %v812, 4
    %v821 = vadd.f32 %v812, %v820
    %v822 = vrot.slane %v821, 2
    %v823 = vadd.f32 %v821, %v822
    %v824 = vrot.slane %v823, 1
    %v825 = vadd.f32 %v823, %v824
    %v826 = vrot.slane %v813, 4
    %v827 = vadd.f32 %v813, %v826
    %v828 = vrot.slane %v827, 2
    %v829 = vadd.f32 %v827, %v828
    %v830 = vrot.slane %v829, 1
    %v831 = vadd.f32 %v829, %v830
    %v832 = vrot.slane %v814, 4
    %v833 = vadd.f32 %v814, %v832
    %v834 = vrot.slane %v833, 2
    %v835 = vadd.f32 %v833, %v834
    %v836 = vrot.slane %v835, 1
    %v837 = vadd.f32 %v835, %v836
    %v838 = vrot.slane %v815, 4
    %v839 = vadd.f32 %v815, %v838
    %v840 = vrot.slane %v839, 2
    %v841 = vadd.f32 %v839, %v840
    %v842 = vrot.slane %v841, 1
    %v843 = vadd.f32 %v841, %v842
    %v844 = vrot.slane %v816, 4
    %v845 = vadd.f32 %v816, %v844
    %v846 = vrot.slane %v845, 2
    %v847 = vadd.f32 %v845, %v846
    %v848 = vrot.slane %v847, 1
    %v849 = vadd.f32 %v847, %v848
    %v850 = vrot.slane %v817, 4
    %v851 = vadd.f32 %v817, %v850
    %v852 = vrot.slane %v851, 2
    %v853 = vadd.f32 %v851, %v852
    %v854 = vrot.slane %v853, 1
    %v855 = vadd.f32 %v853, %v854
    %v856 = vrot.slane %v818, 4
    %v857 = vadd.f32 %v818, %v856
    %v858 = vrot.slane %v857, 2
    %v859 = vadd.f32 %v857, %v858
    %v860 = vrot.slane %v859, 1
    %v861 = vadd.f32 %v859, %v860
    %v862 = vrot.slane %v819, 4
    %v863 = vadd.f32 %v819, %v862
    %v864 = vrot.slane %v863, 2
    %v865 = vadd.f32 %v863, %v864
    %v866 = vrot.slane %v865, 1
    %v867 = vadd.f32 %v865, %v866
    %868 = vst [vmem:[#allocation11] sm:$0x1] %v825
    %869 = vst [vmem:[#allocation11 + $0x1] sm:$0x1] %v831
    %870 = vst [vmem:[#allocation11 + $0x2] sm:$0x1] %v837
    %871 = vst [vmem:[#allocation11 + $0x3] sm:$0x1] %v843
    %872 = vst [vmem:[#allocation11 + $0x4] sm:$0x1] %v849
    %873 = vst [vmem:[#allocation11 + $0x5] sm:$0x1] %v855
    %874 = vst [vmem:[#allocation11 + $0x6] sm:$0x1] %v861
    %875 = vst [vmem:[#allocation11 + $0x7] sm:$0x1] %v867
    %v876 = vlaneseq
    %v877 = vshrl.u32 %v876, 7
    %v878 = vsub.s32 %v530, %v877
    %v879 = vrot.slane %v775, %v878
    %v880 = vlaneseq
    %v881 = vshrl.u32 %v880, 7
    %v882 = vsub.s32 %v530, %v881
    %v883 = vrot.slane %v780, %v882
    %v884 = vlaneseq
    %v885 = vshrl.u32 %v884, 7
    %v886 = vsub.s32 %v530, %v885
    %v887 = vrot.slane %v785, %v886
    %v888 = vlaneseq
    %v889 = vshrl.u32 %v888, 7
    %v890 = vsub.s32 %v530, %v889
    %v891 = vrot.slane %v790, %v890
    %v892 = vlaneseq
    %v893 = vshrl.u32 %v892, 7
    %v894 = vsub.s32 %v530, %v893
    %v895 = vrot.slane %v795, %v894
    %v896 = vlaneseq
    %v897 = vshrl.u32 %v896, 7
    %v898 = vsub.s32 %v530, %v897
    %v899 = vrot.slane %v800, %v898
    %v900 = vlaneseq
    %v901 = vshrl.u32 %v900, 7
    %v902 = vsub.s32 %v530, %v901
    %v903 = vrot.slane %v805, %v902
    %v904 = vlaneseq
    %v905 = vshrl.u32 %v904, 7
    %v906 = vsub.s32 %v530, %v905
    %v907 = vrot.slane %v810, %v906
    %vm916 = vcmask 57344
    %917 = vst.msk [vmem:[#allocation12] sm:$0x1] %vm916, %v879
    %918 = vst.msk [vmem:[#allocation12 + $0x1] sm:$0x1] %vm916, %v883
    %919 = vst.msk [vmem:[#allocation12 + $0x2] sm:$0x1] %vm916, %v887
    %920 = vst.msk [vmem:[#allocation12 + $0x3] sm:$0x1] %vm916, %v891
    %921 = vst.msk [vmem:[#allocation12 + $0x4] sm:$0x1] %vm916, %v895
    %922 = vst.msk [vmem:[#allocation12 + $0x5] sm:$0x1] %vm916, %v899
    %923 = vst.msk [vmem:[#allocation12 + $0x6] sm:$0x1] %vm916, %v903
    %924 = vst.msk [vmem:[#allocation12 + $0x7] sm:$0x1] %vm916, %v907
    // Predicated region
    $region46: #{tpu_custom_call.1} parent=1 // pred_check
      _
    $region47: #{tpu_custom_call.1} parent=1 // pred_check_branch
      %926 = sbr.rel (0) target = $region49
    $region48: #{tpu_custom_call.1} parent=1 // pred_region
      %s928 = ssub.s32 128, 128
      %929 = vsyncadd [#allocation5], %s928
      %s930 = sshll.u32 [#allocation11], 4
      %s931 = int_to_ptr.vmem [resolvable:$true] %s930
      %936 = dma.vmem_to_hbm [thread:$0]  %s931, 128, %s7, [#allocation5], 16, 16, 1
    $region49: #{tpu_custom_call.1} parent=1 // pred_fallthru
      _
    // Predicated region
    $region50: #{tpu_custom_call.1} parent=1 // pred_check
      _
    $region51: #{tpu_custom_call.1} parent=1 // pred_check_branch
      %938 = sbr.rel (0) target = $region53
    $region52: #{tpu_custom_call.1} parent=1 // pred_region
      %s940 = ssub.s32 128, 128
      %941 = vsyncadd [#allocation13], %s940
      %s942 = sshll.u32 [#allocation12], 4
      %s943 = int_to_ptr.vmem [resolvable:$true] %s942
      %948 = dma.vmem_to_hbm [thread:$0]  %s943, 128, %s8, [#allocation13], 16, 16, 1
    $region53: #{tpu_custom_call.1} parent=1 // pred_fallthru
      _
    // Predicated region
    $region54: #{tpu_custom_call.1} parent=1 // pred_check
      _
    $region55: #{tpu_custom_call.1} parent=1 // pred_check_branch
      %950 = sbr.rel (0) target = $region57
    $region56: #{tpu_custom_call.1} parent=1 // pred_region
      %951 = dma.done [#allocation5], 128
    $region57: #{tpu_custom_call.1} parent=1 // pred_fallthru
      _
    // Predicated region
    $region58: #{tpu_custom_call.1} parent=1 // pred_check
      _
    $region59: #{tpu_custom_call.1} parent=1 // pred_check_branch
      %953 = sbr.rel (0) target = $region61
    $region60: #{tpu_custom_call.1} parent=1 // pred_region
      %954 = dma.done [#allocation13], 128
    $region61: #{tpu_custom_call.1} parent=1 // pred_fallthru
      _
    %955 = vsyncpa [#allocation4], 1
    %956 = vsyncpa [#allocation7], 1
    %957 = vsyncpa [#allocation10], 1
    %958 = vsyncpa [#allocation5], 1
    %959 = vsyncpa [#allocation13], 1

</llo_original>
